<compile_context>
chip_gen: v7x
topology: tpu7x:2x2x1
jax: 0.10.0
libtpu: 0.0.40
codegen_flags: <defaults>
</compile_context>

<pallas_src>
import functools
import numpy as np
import jax
import jax.numpy as jnp
from jax.experimental import pallas as pl
from jax.experimental.pallas import tpu as pltpu


# ----------------------------- kernel -----------------------------

def _dyt_kernel(alpha_ref, x_ref, w_ref, b_ref, o_ref, *, compute_dtype):
    # alpha_ref: (1,1) scalar in SMEM (f32); x_ref/o_ref: (tm, tl); w_ref/b_ref: (1, tl).
    a = alpha_ref[0, 0].astype(compute_dtype)
    x = x_ref[...].astype(compute_dtype)
    y = jnp.tanh(a * x)
    o_ref[...] = (y * w_ref[...].astype(compute_dtype)
                  + b_ref[...].astype(compute_dtype)).astype(o_ref.dtype)


# ----------------------------- sizing helpers -----------------------------

def _vmem_capacity_bytes():
    try:
        return int(pltpu.get_tpu_info().vmem_capacity_bytes)
    except Exception:
        return 64 * 1024 * 1024            # conservative default (v7x-sized)


def _budgets():
    """(block_budget_bytes, vmem_limit_bytes) per TPU generation."""
    cap = _vmem_capacity_bytes()
    if cap >= 100 * 1024 * 1024:           # v5e / v6e: 128 MiB VMEM
        return 6 * 1024 * 1024, 64 * 1024 * 1024
    return 4 * 1024 * 1024, 32 * 1024 * 1024   # v7x: 64 MiB VMEM per TC


def _bf16_compute_ok():
    # v5e has no bf16 VPU/EUP -> keep f32 compute there; v6e/v7x do bf16 natively.
    try:
        kind = jax.devices()[0].device_kind.lower()
        return "v5" not in kind
    except Exception:
        return False


def _compute_dtype(x_dtype):
    if x_dtype == jnp.bfloat16 and _bf16_compute_ok():
        return jnp.bfloat16
    return jnp.float32


def _lane_fold_factor(M, L, cap=4096, target=512):
    """Largest divisor k of M with k*L <= cap, used only when L < target.
    Folding leading rows into lanes keeps vregs full and stores unmasked."""
    if L >= target or L <= 0 or M <= 1:
        return 1
    best = 1
    kmax = min(M, max(cap // L, 1))
    for k in range(1, kmax + 1):
        if M % k == 0:
            best = k
    return best


def _choose_tiles(M, L, itemsize, block_budget):
    """VMEM-budgeted 2-D tiles. Lane tile: multiple of 128 or full L. Row tile:
    multiple of the packing granule or full M, with the tile count rounded to an
    even number so v7x's two TensorCores get balanced work."""
    sub = {4: 8, 2: 16, 1: 32}.get(itemsize, 8)
    TL_MAX = 4096                               # multiple of 128
    tl = L if L <= TL_MAX else TL_MAX
    tm_cap = max(block_budget // max(tl * itemsize, 1), sub)
    if M <= tm_cap:
        return M, tl                            # full row extent (always legal)
    tm_cap = max((tm_cap // sub) * sub, sub)
    n = -(-M // tm_cap)                         # ceil tile count at the cap
    if n % 2:
        n += 1                                  # even count -> 2-TC balance
    tm = -(-M // n)                             # balanced tile size
    tm = -(-tm // sub) * sub                    # round up to sublane granule
    tm = max(min(tm, tm_cap), sub)
    return tm, tl


# ----------------------------- driver -----------------------------

def _run_dyt(x2d, w_row, b_row, alpha):
    """x2d: (M, L). w_row/b_row: (L,) per-lane scale/shift. alpha: scalar-like."""
    M, L = x2d.shape

    # Lane densification for narrow L (wrapper-side glue, not hot-path work).
    k = _lane_fold_factor(M, L)
    if k > 1:
        x2d = x2d.reshape(M // k, k * L)
        w_row = jnp.tile(w_row, k)
        b_row = jnp.tile(b_row, k)
        M, L = x2d.shape

    itemsize = jnp.dtype(x2d.dtype).itemsize
    block_budget, vmem_limit = _budgets()
    tm, tl = _choose_tiles(M, L, itemsize, block_budget)
    n_l = pl.cdiv(L, tl)
    n_m = pl.cdiv(M, tm)
    grid = (n_l, n_m)                           # lane-tile OUTER, row-tile INNER:
                                                # weight/bias block index constant
                                                # across the whole inner sweep.

    alpha2d = jnp.asarray(alpha, jnp.float32).reshape(1, 1)
    w2d = w_row.reshape(1, L)
    b2d = b_row.reshape(1, L)

    cd = _compute_dtype(x2d.dtype)
    kernel = functools.partial(_dyt_kernel, compute_dtype=cd)

    cost = pl.CostEstimate(
        flops=3 * M * L,                        # mul, mul, add
        transcendentals=M * L,                  # tanh
        bytes_accessed=2 * M * L * itemsize
        + 2 * L * jnp.dtype(w2d.dtype).itemsize + 4,
    )

    return pl.pallas_call(
        kernel,
        out_shape=jax.ShapeDtypeStruct((M, L), x2d.dtype),
        grid=grid,
        in_specs=[
            pl.BlockSpec((1, 1), lambda j, i: (0, 0), memory_space=pltpu.SMEM),
            pl.BlockSpec((tm, tl), lambda j, i: (i, j)),
            pl.BlockSpec((1, tl), lambda j, i: (0, j)),   # constant over inner i
            pl.BlockSpec((1, tl), lambda j, i: (0, j)),
        ],
        out_specs=pl.BlockSpec((tm, tl), lambda j, i: (i, j)),
        compiler_params=pltpu.CompilerParams(
            dimension_semantics=("parallel", "parallel"),
            vmem_limit_bytes=vmem_limit,
        ),
        cost_estimate=cost,
    )(alpha2d, x2d, w2d, b2d)


def dynamic_tanh(x, alpha, weight, bias, channels_last):
    """Matches DynamicTanh.forward.

    channels_last=True : weight/bias broadcast along the LAST axis of x.
    channels_last=False: weight[:, None]/bias[:, None] -> channel axis is the
                         second-to-last axis of x (exactly torch's broadcast).
    """
    orig_shape = x.shape
    C = weight.shape[0]
    if channels_last:
        assert orig_shape[-1] == C
        x2d = x.reshape(-1, C)
        w_row = weight
        b_row = bias
    else:
        assert orig_shape[-2] == C
        l_last = orig_shape[-1]
        # Lane-dense layout: fold (C, l_last) into the lane axis; repeat the
        # per-channel scale/shift l_last times (wrapper-side glue).
        x2d = x.reshape(-1, C * l_last)
        w_row = jnp.repeat(weight, l_last)
        b_row = jnp.repeat(bias, l_last)
    out = _run_dyt(x2d, w_row, b_row, alpha)
    return out.reshape(orig_shape)


# ----------------------------- self-test -----------------------------

if __name__ == "__main__":
    key = jax.random.PRNGKey(0)
    k1, k2, k3, k4, k5, k6, k7, k8, k9 = jax.random.split(key, 9)

    alpha = jnp.ones((1,), jnp.float32) * 0.5          # alpha_init_value = 0.5

    # ---- channels_first: (batch, channels, seq) = (2, 4, 16), normalized_shape = 4 ----
    B, C, T = 2, 4, 16
    x_cf = jax.random.normal(k1, (B, C, T), dtype=jnp.float32)
    w_cf = jax.random.normal(k2, (C,), dtype=jnp.float32)
    b_cf = jax.random.normal(k3, (C,), dtype=jnp.float32)

    out_cf = jax.block_until_ready(dynamic_tanh(x_cf, alpha, w_cf, b_cf, channels_last=False))
    ref_cf = jnp.tanh(alpha[0] * x_cf) * w_cf[:, None] + b_cf[:, None]
    assert np.allclose(np.asarray(out_cf), np.asarray(ref_cf), atol=1e-5)

    # ---- channels_last: (batch, seq, hidden) = (2, 8, 32), normalized_shape = 32 ----
    Bc, S, Dh = 2, 8, 32
    x_cl = jax.random.normal(k4, (Bc, S, Dh), dtype=jnp.float32)
    w_cl = jax.random.normal(k5, (Dh,), dtype=jnp.float32)
    b_cl = jax.random.normal(k6, (Dh,), dtype=jnp.float32)

    out_cl = jax.block_until_ready(dynamic_tanh(x_cl, alpha, w_cl, b_cl, channels_last=True))
    ref_cl = jnp.tanh(alpha[0] * x_cl) * w_cl + b_cl
    assert np.allclose(np.asarray(out_cl), np.asarray(ref_cl), atol=1e-5)

    # ---- channels_last, awkward sizes (exercises the lane-fold with odd divisors) ----
    x_4d = jax.random.normal(k7, (3, 5, 7, 96), dtype=jnp.float32)
    w_4d = jax.random.normal(k8, (96,), dtype=jnp.float32)
    b_4d = jax.random.normal(k9, (96,), dtype=jnp.float32)

    out_4d = jax.block_until_ready(dynamic_tanh(x_4d, alpha, w_4d, b_4d, channels_last=True))
    ref_4d = jnp.tanh(alpha[0] * x_4d) * w_4d + b_4d
    assert np.allclose(np.asarray(out_4d), np.asarray(ref_4d), atol=1e-5)

    print("KERNEL_OK")
</pallas_src>

<mosaic_0001>
module attributes {stable_mosaic.version = 11 : i64} {
  func.func @_dyt_kernel(%arg0: i32, %arg1: i32, %arg2: memref<1x1xf32, #tpu.memory_space<smem>>, %arg3: memref<1x128xf32, #tpu.memory_space<vmem>>, %arg4: memref<1x128xf32, #tpu.memory_space<vmem>>, %arg5: memref<1x128xf32, #tpu.memory_space<vmem>>, %arg6: memref<1x128xf32, #tpu.memory_space<vmem>>) attributes {dimension_semantics = [#tpu.dimension_semantics<parallel>, #tpu.dimension_semantics<parallel>], iteration_bounds = array<i64: 1, 1>, scalar_prefetch = 0 : i64, scratch_operands = 0 : i64, tpu.core_type = #tpu.core_type<tc>, window_params = [{transform_indices = @transform_0, window_bounds = array<i64: 1, 1>}, {transform_indices = @transform_1, window_bounds = array<i64: 1, 128>}, {transform_indices = @transform_2, window_bounds = array<i64: 1, 128>}, {transform_indices = @transform_3, window_bounds = array<i64: 1, 128>}, {transform_indices = @transform_4, window_bounds = array<i64: 1, 128>}]} {
    %c0 = arith.constant 0 : index
    %c0_0 = arith.constant 0 : index
    %0 = memref.load %arg2[%c0, %c0_0] : memref<1x1xf32, #tpu.memory_space<smem>>
    %c0_1 = arith.constant 0 : index
    %c0_2 = arith.constant 0 : index
    %1 = vector.load %arg3[%c0_1, %c0_2] : memref<1x128xf32, #tpu.memory_space<vmem>>, vector<1x128xf32>
    %2 = vector.broadcast %0 : f32 to vector<1x128xf32>
    %3 = arith.mulf %2, %1 : vector<1x128xf32>
    %4 = math.tanh %3 : vector<1x128xf32>
    %c0_3 = arith.constant 0 : index
    %c0_4 = arith.constant 0 : index
    %5 = vector.load %arg4[%c0_3, %c0_4] : memref<1x128xf32, #tpu.memory_space<vmem>>, vector<1x128xf32>
    %6 = arith.mulf %4, %5 : vector<1x128xf32>
    %c0_5 = arith.constant 0 : index
    %c0_6 = arith.constant 0 : index
    %7 = vector.load %arg5[%c0_5, %c0_6] : memref<1x128xf32, #tpu.memory_space<vmem>>, vector<1x128xf32>
    %8 = arith.addf %6, %7 : vector<1x128xf32>
    %c0_7 = arith.constant 0 : index
    %c0_8 = arith.constant 0 : index
    %9 = vector.load %arg6[%c0_7, %c0_8] : memref<1x128xf32, #tpu.memory_space<vmem>>, vector<1x128xf32>
    tpu.vector_store %arg6[%c0_7, %c0_8], %8 {strides = array<i32>} : memref<1x128xf32, #tpu.memory_space<vmem>>, vector<1x128xf32>,
    return
  }
  func.func @transform_0(%arg0: i32, %arg1: i32) -> (i32, i32) {
    %c0_i32 = arith.constant 0 : i32
    %c0_i32_0 = arith.constant 0 : i32
    %c0_i32_1 = arith.constant 0 : i32
    return %c0_i32, %c0_i32_0 : i32, i32
  }
  func.func @transform_1(%arg0: i32, %arg1: i32) -> (i32, i32) {
    %c0_i32 = arith.constant 0 : i32
    return %arg1, %arg0 : i32, i32
  }
  func.func @transform_2(%arg0: i32, %arg1: i32) -> (i32, i32) {
    %c0_i32 = arith.constant 0 : i32
    %c0_i32_0 = arith.constant 0 : i32
    return %c0_i32, %arg0 : i32, i32
  }
  func.func @transform_3(%arg0: i32, %arg1: i32) -> (i32, i32) {
    %c0_i32 = arith.constant 0 : i32
    %c0_i32_0 = arith.constant 0 : i32
    return %c0_i32, %arg0 : i32, i32
  }
  func.func @transform_4(%arg0: i32, %arg1: i32) -> (i32, i32) {
    %c0_i32 = arith.constant 0 : i32
    return %arg1, %arg0 : i32, i32
  }
}

</mosaic_0001>

<llo_original>
// kernel: tpu_custom_call.1
$region0: #{tpu_custom_call.1}
  #allocation0 [shape = 'u32[]', space=smem, size = 0x4, offset = 0x4, fixed_abs, tag = 'smem constant byte address 0x4 - core index']
  #allocation1 [shape = 'u32[144,128]{1,0:T(1,128)}', space=vmem, size = 0x12000, scoped, tag = 'internal scratch']
  #allocation2 [shape = 'f32[1,1]{1,0:T(1,128)S(6)}', space=smem, size = 0x200, scoped, tag = 'scoped memory for tpu_custom_call.1']
  %s0 = inlined_call_operand.<no memory space> [shape: f32[1,1], index: 0, kind: input, shape index: {}]
  %s1 = inlined_call_operand.vmem [shape: f32[1,128], index: 1, kind: input, shape index: {}]
  %s2 = inlined_call_operand.vmem [shape: f32[1,128], index: 2, kind: input, shape index: {}]
  %s3 = inlined_call_operand.vmem [shape: f32[1,128], index: 3, kind: input, shape index: {}]
  %s4 = inlined_call_operand.hbm [shape: f32[1,128], index: 4, kind: output, shape index: {}]
  %s5 = sld [smem:[#allocation0]]
  $region26: #{tpu_custom_call.1} parent=0
    _
  %s7 = ssub.s32 1, %s5
  %s8 = scalar_select 0, %s7, %s5
  %9 = sst [smem:[#allocation2]] %s0
  $region1: #{tpu_custom_call.1} parent=0
    #allocation3 [shape = 'u8[512]{0}', space=vmem, size = 0x400, scoped, tag = 'output window, operand 0, single buffered']
    #allocation4 [shape = 's32[1]{0}', space=sflag, size = 0x4, scoped, tag = 'scoped memory for tpu_custom_call.1']
    %10 = vsyncpa [#allocation4], 0
    // Predicated region
    $region2: #{tpu_custom_call.1} parent=1 // pred_check
      _
    $region3: #{tpu_custom_call.1} parent=1 // pred_check_branch
      %12 = sbr.rel (0) target = $region5
    $region4: #{tpu_custom_call.1} parent=1 // pred_region
      _
    $region5: #{tpu_custom_call.1} parent=1 // pred_fallthru
      _
    // Predicated region
    $region6: #{tpu_custom_call.1} parent=1 // pred_check
      _
    $region7: #{tpu_custom_call.1} parent=1 // pred_check_branch
      %14 = sbr.rel (0) target = $region9
    $region8: #{tpu_custom_call.1} parent=1 // pred_region
      _
    $region9: #{tpu_custom_call.1} parent=1 // pred_fallthru
      _
    // Predicated region
    $region10: #{tpu_custom_call.1} parent=1 // pred_check
      _
    $region11: #{tpu_custom_call.1} parent=1 // pred_check_branch
      %16 = sbr.rel (0) target = $region13
    $region12: #{tpu_custom_call.1} parent=1 // pred_region
      _
    $region13: #{tpu_custom_call.1} parent=1 // pred_fallthru
      _
    // Predicated region
    $region14: #{tpu_custom_call.1} parent=1 // pred_check
      _
    $region15: #{tpu_custom_call.1} parent=1 // pred_check_branch
      %18 = sbr.rel (0) target = $region17
    $region16: #{tpu_custom_call.1} parent=1 // pred_region
      _
    $region17: #{tpu_custom_call.1} parent=1 // pred_fallthru
      _
    %s19 = sld [smem:[#allocation2]]
    %v20 = vld [vmem:[%s1] sm:$0x1]
    %v21 = vstv %s19
    %v22 = vmul.f32 %v21, %v20
    %v23 = vtanh.pop %v22
    %v24 = vld [vmem:[%s2] sm:$0x1]
    %v25 = vmul.f32 %v23, %v24
    %v26 = vld [vmem:[%s3] sm:$0x1]
    %v27 = vadd.f32 %v25, %v26
    %28 = vst [vmem:[#allocation3] sm:$0x1] %v27
    // Predicated region
    $region18: #{tpu_custom_call.1} parent=1 // pred_check
      _
    $region19: #{tpu_custom_call.1} parent=1 // pred_check_branch
      %30 = sbr.rel (0) target = $region21
    $region20: #{tpu_custom_call.1} parent=1 // pred_region
      %s32 = ssub.s32 16, 16
      %33 = vsyncadd [#allocation4], %s32
      %s35 = sshll.u32 [#allocation3], 4
      %s36 = int_to_ptr.vmem [resolvable:$true] %s35
      %38 = dma.vmem_to_hbm [thread:$0]  %s36, 16, %s4, [#allocation4]
    $region21: #{tpu_custom_call.1} parent=1 // pred_fallthru
      _
    // Predicated region
    $region22: #{tpu_custom_call.1} parent=1 // pred_check
      _
    $region23: #{tpu_custom_call.1} parent=1 // pred_check_branch
      %40 = sbr.rel (0) target = $region25
    $region24: #{tpu_custom_call.1} parent=1 // pred_region
      %41 = dma.done [#allocation4], 16
    $region25: #{tpu_custom_call.1} parent=1 // pred_fallthru
      _
    %42 = vsyncpa [#allocation4], 1

</llo_original>
